<compile_context>
chip_gen: v5e
topology: v5e:2x2
jax: 0.10.0
libtpu: 0.0.40
codegen_flags: <defaults>
</compile_context>

<pallas_src>
import functools

import jax
import jax.numpy as jnp
from jax.experimental import pallas as pl
from jax.experimental.pallas import tpu as pltpu

LANE_W = 128          # lane width of the flattened 2-D view
ROW_TILE_MAX = 2048   # 2048 * 128 * 4B = 1 MiB f32 per input tile
NUM_CORES = 2         # leading 'parallel' axis: both TCs on v7x, sequential elsewhere


def _cdiv(a, b):
    return -(-a // b)


def _round_up(a, m):
    return _cdiv(a, m) * m


def _mse_partial_kernel(x_ref, t_ref, o_ref, acc_ref, *,
                        row_tile, rows_valid, needs_mask):
    """Accumulate per-lane partial sums of (x - t)^2 into an (8, LANE_W) VMEM
    accumulator; write this core's partial-sum slab on its last inner step."""
    c = pl.program_id(0)
    i = pl.program_id(1)
    n_i = pl.num_programs(1)

    @pl.when(i == 0)
    def _():
        acc_ref[...] = jnp.zeros_like(acc_ref)

    # Cast in-kernel: low-precision inputs stay low-precision in HBM.
    d = x_ref[...].astype(jnp.float32) - t_ref[...].astype(jnp.float32)
    sq = d * d

    if needs_mask:
        # Zero contributions from rows beyond the true row count
        # (ragged last block / clamped duplicate blocks).
        blk = c * n_i + i
        row_ids = blk * row_tile + jax.lax.broadcasted_iota(
            jnp.int32, (row_tile, LANE_W), 0)
        sq = jnp.where(row_ids < rows_valid, sq, 0.0)

    # Sublane-group reduction only (pure VPU vreg adds); running sum stays per-lane.
    acc_ref[...] += sq.reshape(row_tile // 8, 8, LANE_W).sum(axis=0)

    @pl.when(i == n_i - 1)
    def _():
        o_ref[0] = acc_ref[...]


@jax.jit
def _mse_mean(global_input, tgt):
    n_true = global_input.size

    # Flatten to a lane-dense (rows, 128) view; no dtype cast, no tile-size padding.
    flat_x = jnp.ravel(global_input)
    flat_t = jnp.ravel(tgt)
    rem = n_true % LANE_W
    if rem:
        # Minimal pad to a lane multiple; pads are zero in both operands so they
        # contribute 0 to the squared-difference sum.
        pad = LANE_W - rem
        flat_x = jnp.concatenate([flat_x, jnp.zeros((pad,), flat_x.dtype)])
        flat_t = jnp.concatenate([flat_t, jnp.zeros((pad,), flat_t.dtype)])
    rows = flat_x.size // LANE_W
    x2 = flat_x.reshape(rows, LANE_W)
    t2 = flat_t.reshape(rows, LANE_W)

    # Tile sizing: keep the sublane-group reshape legal (multiple of 8) and cap at
    # ~1 MiB f32 per tile so double-buffering fits every generation's scoped VMEM.
    row_tile = min(ROW_TILE_MAX, _round_up(rows, 8))
    total_blocks = _cdiv(rows, row_tile)
    # Collapse the core axis when there is only one block so no tile is read twice.
    num_cores = min(NUM_CORES, total_blocks)
    steps_per_core = _cdiv(total_blocks, num_cores)
    needs_mask = (rows % row_tile != 0) or (num_cores * steps_per_core != total_blocks)

    def in_map(c, i):
        # Clamp so over-coverage blocks never DMA past the array; their
        # contribution is zeroed by the in-kernel row mask.
        return (jnp.minimum(c * steps_per_core + i, total_blocks - 1), 0)

    kernel = functools.partial(
        _mse_partial_kernel,
        row_tile=row_tile, rows_valid=rows, needs_mask=needs_mask)

    partials = pl.pallas_call(
        kernel,
        out_shape=jax.ShapeDtypeStruct((num_cores, 8, LANE_W), jnp.float32),
        grid_spec=pltpu.PrefetchScalarGridSpec(
            num_scalar_prefetch=0,
            grid=(num_cores, steps_per_core),
            in_specs=[
                pl.BlockSpec((row_tile, LANE_W), in_map),
                pl.BlockSpec((row_tile, LANE_W), in_map),
            ],
            out_specs=pl.BlockSpec((1, 8, LANE_W), lambda c, i: (c, 0, 0)),
            scratch_shapes=[pltpu.VMEM((8, LANE_W), jnp.float32)],
        ),
        compiler_params=pltpu.CompilerParams(
            dimension_semantics=("parallel", "arbitrary"),
        ),
    )(x2, t2)

    # Single cross-lane reduction + mean in the wrapper (tiny: <=2*8*128 floats).
    return jnp.sum(partials) / jnp.float32(n_true)


def global_local_loss(x, target):
    """x = (global_input, local_input); target = (target, target_scene).

    Matches GlobalLocalLoss.forward: returns mean((global_input - target)**2)
    as a float32 scalar.
    """
    global_input, _local_input = x
    tgt, _target_scene = target
    assert global_input.shape == tgt.shape

    if global_input.size == 0:
        # torch MSELoss(reduction='mean') over an empty tensor yields nan.
        return jnp.float32(jnp.nan)

    return _mse_mean(global_input, tgt)


if __name__ == "__main__":
    key = jax.random.PRNGKey(0)
    k1, k2, k3, k4 = jax.random.split(key, 4)

    B, C, H, W = 2, 4, 16, 16  # NCHW, as in the PyTorch module
    # global_input / target in [0,1] (BCE-compatible, as the original module expects)
    global_input = jax.nn.sigmoid(jax.random.normal(k1, (B, C, H, W), jnp.float32))
    target = (jax.random.uniform(k2, (B, C, H, W), jnp.float32) > 0.5).astype(jnp.float32)

    # Unused (dead) branch inputs, kept for interface fidelity.
    local_input = jax.random.normal(k3, (B, 5), jnp.float32)
    target_scene = jax.random.randint(k4, (B,), 0, 5)

    loss = global_local_loss((global_input, local_input), (target, target_scene))
    loss = jax.block_until_ready(loss)

    # Reference check in plain JAX.
    ref = jnp.mean((global_input - target) ** 2)
    assert jnp.allclose(loss, ref, rtol=1e-5, atol=1e-6), (loss, ref)

    print("KERNEL_OK")
</pallas_src>

<mosaic_0001>
module attributes {stable_mosaic.version = 11 : i64} {
  func.func @_mse_partial_kernel(%arg0: i32, %arg1: i32, %arg2: memref<16x128xf32, #tpu.memory_space<vmem>>, %arg3: memref<16x128xf32, #tpu.memory_space<vmem>>, %arg4: memref<1x8x128xf32, #tpu.memory_space<vmem>>, %arg5: memref<8x128xf32, #tpu.memory_space<vmem>>) attributes {dimension_semantics = [#tpu.dimension_semantics<parallel>, #tpu.dimension_semantics<arbitrary>], iteration_bounds = array<i64: 1, 1>, scalar_prefetch = 0 : i64, scratch_operands = 1 : i64, tpu.core_type = #tpu.core_type<tc>, window_params = [{transform_indices = @transform_0, window_bounds = array<i64: 16, 128>}, {transform_indices = @transform_1, window_bounds = array<i64: 16, 128>}, {transform_indices = @transform_2, window_bounds = array<i64: 1, 8, 128>}]} {
    %c0_i32 = arith.constant 0 : i32
    %0 = arith.cmpi eq, %arg1, %c0_i32 : i32
    %1 = arith.extui %0 : i1 to i32
    %c0_i32_0 = arith.constant 0 : i32
    %2 = arith.cmpi ne, %1, %c0_i32_0 : i32
    scf.if %2 {
      %cst_10 = arith.constant 0.000000e+00 : f32
      %15 = vector.broadcast %cst_10 : f32 to vector<8x128xf32>
      %c0_11 = arith.constant 0 : index
      %c0_12 = arith.constant 0 : index
      %16 = vector.load %arg5[%c0_11, %c0_12] : memref<8x128xf32, #tpu.memory_space<vmem>>, vector<8x128xf32>
      tpu.vector_store %arg5[%c0_11, %c0_12], %15 {strides = array<i32>} : memref<8x128xf32, #tpu.memory_space<vmem>>, vector<8x128xf32>,
    } else {
    }
    %c0 = arith.constant 0 : index
    %c0_1 = arith.constant 0 : index
    %3 = vector.load %arg2[%c0, %c0_1] : memref<16x128xf32, #tpu.memory_space<vmem>>, vector<16x128xf32>
    %c0_2 = arith.constant 0 : index
    %c0_3 = arith.constant 0 : index
    %4 = vector.load %arg3[%c0_2, %c0_3] : memref<16x128xf32, #tpu.memory_space<vmem>>, vector<16x128xf32>
    %5 = arith.subf %3, %4 : vector<16x128xf32>
    %6 = arith.mulf %5, %5 : vector<16x128xf32>
    %c0_4 = arith.constant 0 : index
    %c0_5 = arith.constant 0 : index
    %7 = vector.load %arg5[%c0_4, %c0_5] : memref<8x128xf32, #tpu.memory_space<vmem>>, vector<8x128xf32>
    %8 = vector.shape_cast %6 : vector<16x128xf32> to vector<2x8x128xf32>
    %cst = arith.constant dense<0.000000e+00> : vector<8x128xf32>
    %9 = vector.multi_reduction <add>, %8, %cst [0] : vector<2x8x128xf32> to vector<8x128xf32>
    %10 = arith.addf %7, %9 : vector<8x128xf32>
    %c0_6 = arith.constant 0 : index
    %c0_7 = arith.constant 0 : index
    %11 = vector.load %arg5[%c0_6, %c0_7] : memref<8x128xf32, #tpu.memory_space<vmem>>, vector<8x128xf32>
    tpu.vector_store %arg5[%c0_6, %c0_7], %10 {strides = array<i32>} : memref<8x128xf32, #tpu.memory_space<vmem>>, vector<8x128xf32>,
    %c0_i32_8 = arith.constant 0 : i32
    %12 = arith.cmpi eq, %arg1, %c0_i32_8 : i32
    %13 = arith.extui %12 : i1 to i32
    %c0_i32_9 = arith.constant 0 : i32
    %14 = arith.cmpi ne, %13, %c0_i32_9 : i32
    scf.if %14 {
      %c0_10 = arith.constant 0 : index
      %c0_11 = arith.constant 0 : index
      %15 = vector.load %arg5[%c0_10, %c0_11] : memref<8x128xf32, #tpu.memory_space<vmem>>, vector<8x128xf32>
      %c0_12 = arith.constant 0 : index
      %c0_13 = arith.constant 0 : index
      %c0_14 = arith.constant 0 : index
      %16 = vector.load %arg4[%c0_12, %c0_13, %c0_14] : memref<1x8x128xf32, #tpu.memory_space<vmem>>, vector<1x8x128xf32>
      %17 = vector.shape_cast %16 : vector<1x8x128xf32> to vector<8x128xf32>
      %18 = vector.shape_cast %15 : vector<8x128xf32> to vector<1x8x128xf32>
      tpu.vector_store %arg4[%c0_12, %c0_13, %c0_14], %18 {strides = array<i32>} : memref<1x8x128xf32, #tpu.memory_space<vmem>>, vector<1x8x128xf32>,
    } else {
    }
    return
  }
  func.func @transform_0(%arg0: i32, %arg1: i32) -> (i32, i32) {
    %c1_i32 = arith.constant 1 : i32
    %0 = arith.muli %arg0, %c1_i32 : i32
    %1 = arith.addi %0, %arg1 : i32
    %c0_i32 = arith.constant 0 : i32
    %2 = arith.minsi %1, %c0_i32 : i32
    %c0_i32_0 = arith.constant 0 : i32
    %c0_i32_1 = arith.constant 0 : i32
    return %2, %c0_i32_0 : i32, i32
  }
  func.func @transform_1(%arg0: i32, %arg1: i32) -> (i32, i32) {
    %c1_i32 = arith.constant 1 : i32
    %0 = arith.muli %arg0, %c1_i32 : i32
    %1 = arith.addi %0, %arg1 : i32
    %c0_i32 = arith.constant 0 : i32
    %2 = arith.minsi %1, %c0_i32 : i32
    %c0_i32_0 = arith.constant 0 : i32
    %c0_i32_1 = arith.constant 0 : i32
    return %2, %c0_i32_0 : i32, i32
  }
  func.func @transform_2(%arg0: i32, %arg1: i32) -> (i32, i32, i32) {
    %c0_i32 = arith.constant 0 : i32
    %c0_i32_0 = arith.constant 0 : i32
    %c0_i32_1 = arith.constant 0 : i32
    return %arg0, %c0_i32, %c0_i32_0 : i32, i32, i32
  }
}

</mosaic_0001>

<llo_original>
// kernel: _mse_mean.1
$region0: #{_mse_mean.1}
  #allocation0 [shape = 'u32[]', space=smem, size = 0x4, offset = 0x4, fixed_abs, tag = 'smem constant byte address 0x4 - core index']
  #allocation1 [shape = 'u32[72,128]{1,0:T(1,128)}', space=vmem, size = 0x9000, scoped, tag = 'internal scratch']
  #allocation2 [shape = 'f32[8,128]{1,0:T(8,128)}', space=vmem, size = 0x1000, scoped, tag = 'scratch operand']
  %s0 = inlined_call_operand.vmem [shape: f32[16,128], index: 0, kind: input, shape index: {}]
  %s1 = inlined_call_operand.vmem [shape: f32[16,128], index: 1, kind: input, shape index: {}]
  %s2 = inlined_call_operand.vmem [shape: f32[1,8,128], index: 2, kind: output, shape index: {}]
  %s3 = sld [smem:[#allocation0]]
  $region26: #{_mse_mean.1} parent=0
    _
  %s5 = ssub.s32 1, %s3
  %s6 = scalar_select 0, %s5, %s3
  // Predicated region
  $region2: #{_mse_mean.1} parent=0 // pred_check
    _
  $region3: #{_mse_mean.1} parent=0 // pred_check_branch
    %8 = sbr.rel (0) target = $region5
  $region4: #{_mse_mean.1} parent=0 // pred_region
    %s9 = sadd.s32 0, 0
    %p10 = scmp.lt.s32.totalorder %s9, 0
    %s11 = scalar_select %p10, %s9, 0
    %s12 = smul.u32 2, %s11
    %p13 = scmp.lt.s32.totalorder %s12, 1
    %s14 = scalar_select %p13, %s12, 1
    %s15 = smul.addr %s14, 8
    %s16 = scalar_lea.vmem %s0, %s15
    %s17 = sadd.s32 0, 0
    %p18 = scmp.lt.s32.totalorder %s17, 0
    %s19 = scalar_select %p18, %s17, 0
    %s20 = smul.u32 2, %s19
  $region5: #{_mse_mean.1} parent=0 // pred_fallthru
    _
  // Predicated region
  $region6: #{_mse_mean.1} parent=0 // pred_check
    _
  $region7: #{_mse_mean.1} parent=0 // pred_check_branch
    %22 = sbr.rel (0) target = $region9
  $region8: #{_mse_mean.1} parent=0 // pred_region
    %s23 = sadd.s32 0, 0
    %p24 = scmp.lt.s32.totalorder %s23, 0
    %s25 = scalar_select %p24, %s23, 0
    %s26 = smul.u32 2, %s25
    %p27 = scmp.lt.s32.totalorder %s26, 1
    %s28 = scalar_select %p27, %s26, 1
    %s29 = smul.addr %s28, 8
    %s30 = scalar_lea.vmem %s1, %s29
    %s31 = sadd.s32 0, 0
    %p32 = scmp.lt.s32.totalorder %s31, 0
    %s33 = scalar_select %p32, %s31, 0
    %s34 = smul.u32 2, %s33
  $region9: #{_mse_mean.1} parent=0 // pred_fallthru
    _
  %s35 = sadd.s32 0, 0
  %p36 = scmp.lt.s32.totalorder %s35, 0
  %s37 = scalar_select %p36, %s35, 0
  %s38 = smul.u32 2, %s37
  %p39 = scmp.lt.s32.totalorder %s38, 1
  %s40 = scalar_select %p39, %s38, 1
  %s41 = smul.addr %s40, 8
  %s42 = scalar_lea.vmem %s0, %s41
  %s43 = sadd.s32 0, 0
  %p44 = scmp.lt.s32.totalorder %s43, 0
  %s45 = scalar_select %p44, %s43, 0
  %s46 = smul.u32 2, %s45
  %p47 = scmp.lt.s32.totalorder %s46, 1
  %s48 = scalar_select %p47, %s46, 1
  %s49 = smul.addr %s48, 8
  %s50 = scalar_lea.vmem %s1, %s49
  %s51 = sadd.s32 0, 0
  %p52 = scmp.lt.s32.totalorder %s51, 0
  %s53 = scalar_select %p52, %s51, 0
  %s54 = smul.u32 2, %s53
  %p55 = scmp.lt.s32.totalorder %s54, 1
  %s56 = scalar_select %p55, %s54, 1
  %s57 = smul.addr %s56, 8
  %s58 = scalar_lea.vmem %s0, %s57
  %s59 = sadd.s32 0, 0
  %p60 = scmp.lt.s32.totalorder %s59, 0
  %s61 = scalar_select %p60, %s59, 0
  %s62 = smul.u32 2, %s61
  %s63 = sadd.s32 0, 0
  %p64 = scmp.lt.s32.totalorder %s63, 0
  %s65 = scalar_select %p64, %s63, 0
  %s66 = smul.u32 2, %s65
  %p67 = scmp.lt.s32.totalorder %s66, 1
  %s68 = scalar_select %p67, %s66, 1
  %s69 = smul.addr %s68, 8
  %s70 = scalar_lea.vmem %s1, %s69
  %s71 = sadd.s32 0, 0
  %p72 = scmp.lt.s32.totalorder %s71, 0
  %s73 = scalar_select %p72, %s71, 0
  %s74 = smul.u32 2, %s73
  %p75 = scmp.eq.s32.totalorder 0, 0
  // Predicated region
  $region10: #{_mse_mean.1} parent=0 // pred_check
    %p76 = pneg %p75
  $region11: #{_mse_mean.1} parent=0 // pred_check_branch
    %78 = sbr.rel (%p76) target = $region13
  $region12: #{_mse_mean.1} parent=0 // pred_region
    %79 = vst [vmem:[#allocation2] sm:$0xff] 0.0
  $region13: #{_mse_mean.1} parent=0 // pred_fallthru
    _
  %v80 = vld [vmem:[%s58] sm:$0xff]
  %v81 = vld [vmem:[%s58 + $0x8] sm:$0xff]
  %v82 = vld [vmem:[%s70] sm:$0xff]
  %v83 = vld [vmem:[%s70 + $0x8] sm:$0xff]
  %v84 = vsub.f32 %v80, %v82
  %v85 = vsub.f32 %v81, %v83
  %v86 = vmul.f32 %v84, %v84
  %v87 = vmul.f32 %v85, %v85
  %v88 = vld [vmem:[#allocation2] sm:$0xff]
  %v89 = vadd.f32 %v86, %v87
  %v90 = vadd.f32 %v88, %v89
  %91 = vst [vmem:[#allocation2] sm:$0xff] %v90
  // Predicated region
  $region14: #{_mse_mean.1} parent=0 // pred_check
    %p92 = pneg %p75
  $region15: #{_mse_mean.1} parent=0 // pred_check_branch
    %94 = sbr.rel (%p92) target = $region17
  $region16: #{_mse_mean.1} parent=0 // pred_region
    %v95 = vld [vmem:[#allocation2] sm:$0xff]
    %96 = vst [vmem:[%s2] sm:$0xff] %v95
  $region17: #{_mse_mean.1} parent=0 // pred_fallthru
    _
  // Predicated region
  $region18: #{_mse_mean.1} parent=0 // pred_check
    _
  $region19: #{_mse_mean.1} parent=0 // pred_check_branch
    %98 = sbr.rel (0) target = $region21
  $region20: #{_mse_mean.1} parent=0 // pred_region
    _
  $region21: #{_mse_mean.1} parent=0 // pred_fallthru
    _
  // Predicated region
  $region22: #{_mse_mean.1} parent=0 // pred_check
    _
  $region23: #{_mse_mean.1} parent=0 // pred_check_branch
    %100 = sbr.rel (0) target = $region25
  $region24: #{_mse_mean.1} parent=0 // pred_region
    _
  $region25: #{_mse_mean.1} parent=0 // pred_fallthru
    _

</llo_original>
